<compile_context>
chip_gen: v7x
topology: tpu7x:2x2x1
jax: 0.10.0
libtpu: 0.0.40
codegen_flags: <defaults>
</compile_context>

<pallas_src>
import functools

import jax
import jax.numpy as jnp
from jax.experimental import pallas as pl
from jax.experimental.pallas import tpu as pltpu


def _uot_kernel(n_hiddens, t_ref, z_ref, *refs):
    """One batch-tile: (TB, D) of z + all params resident in VMEM."""
    n1 = 3 + 2 * (n_hiddens - 1) + 3   # fused-first-layer + hidden + output params (hn1)
    n2 = 6                             # remaining hypernet2 params
    params = list(refs[: n1 + n2])
    out_ref = refs[n1 + n2]            # packed (TB, D+2) output: dz_dt | g | dlogp

    t = t_ref[0, 0]
    z = z_ref[...]                     # (TB, D)
    TB, D = z.shape
    f32 = jnp.float32

    idx = 0
    Wcat = params[idx][...]; idx += 1      # (D, 2H)  [W1z^T | V1z^T]
    wtcat = params[idx][...]; idx += 1     # (1, 2H)  [w1t   | v1t  ]
    bcat = params[idx][...]; idx += 1      # (1, 2H)  [b1    | c1   ]
    H = Wcat.shape[1] // 2
    hid_Ws, hid_bs = [], []
    for _ in range(n_hiddens - 1):
        hid_Ws.append(params[idx][...]); idx += 1   # (H, H) transposed
        hid_bs.append(params[idx][...]); idx += 1   # (1, H)
    WoutT = params[idx][...]; idx += 1     # (H, D)
    Wout = params[idx][...]; idx += 1      # (D, H)  un-transposed (trace rows)
    bout = params[idx][...]; idx += 1      # (1, D)

    V2T = params[idx][...]; idx += 1       # (H, H)
    c2 = params[idx][...]; idx += 1        # (1, H)
    V3T = params[idx][...]; idx += 1       # (H, H)
    c3 = params[idx][...]; idx += 1        # (1, H)
    VoutT = params[idx][...]; idx += 1     # (H, 1)
    cout = params[idx][...]; idx += 1      # (1, 1)

    # ---- fused first layers of hypernet1 & hypernet2 (shared LHS z) ----
    a_cat = jnp.dot(z, Wcat, preferred_element_type=f32) + t * wtcat + bcat   # (TB, 2H)
    h_cat = jnp.tanh(a_cat)
    h = h_cat[:, :H]                        # hypernet1 first hidden
    hh = h_cat[:, H:]                       # hypernet2 first hidden

    # ---- hyper_net1 forward (keep tanh' for the Jacobian trace) ----
    s_list = [1.0 - h * h]
    for W_T, b in zip(hid_Ws, hid_bs):
        h = jnp.tanh(jnp.dot(h, W_T, preferred_element_type=f32) + b)
        s_list.append(1.0 - h * h)
    dz_dt = jnp.dot(h, WoutT, preferred_element_type=f32) + bout              # (TB, D)

    # ---- exact trace of d(dz_dt)/dz: all D tangent sweeps batched ----
    # Block layout: rows [d*TB : (d+1)*TB] carry the tangent for direction e_d.
    W1zT = Wcat[:, :H]                                                        # (D, H)
    T = jnp.concatenate(
        [s_list[0] * W1zT[d:d + 1, :] for d in range(D)], axis=0)             # (D*TB, H)
    for k, W_T in enumerate(hid_Ws):
        s_full = jnp.concatenate([s_list[k + 1]] * D, axis=0)                 # (D*TB, H)
        T = s_full * jnp.dot(T, W_T, preferred_element_type=f32)
    Wout_rep = jnp.concatenate(
        [jnp.broadcast_to(Wout[d:d + 1, :], (TB, H)) for d in range(D)], axis=0)
    r = jnp.sum(T * Wout_rep, axis=1, keepdims=True)                          # (D*TB, 1)
    trace = r[0:TB]
    for d in range(1, D):
        trace = trace + r[d * TB:(d + 1) * TB]                                # (TB, 1)

    # ---- hyper_net2 remainder ----
    hh = jnp.tanh(jnp.dot(hh, V2T, preferred_element_type=f32) + c2)
    hh = jnp.tanh(jnp.dot(hh, V3T, preferred_element_type=f32) + c3)
    g = jnp.dot(hh, VoutT, preferred_element_type=f32) + cout                 # (TB, 1)

    # single packed, lane-contiguous store: [dz_dt | g | dlogp]
    out_ref[...] = jnp.concatenate([dz_dt, g, g - trace], axis=1)


def uot_forward(t, z, hn1_layers, hn1_out, hn2_layers, hn2_out, n_hiddens):
    """Glue: split/transpose params (PyTorch (out,in) convention) and call the kernel."""
    B, D = z.shape

    W1, b1 = hn1_layers[0]
    V1, c1 = hn2_layers[0]
    # Fuse the two first layers (shared LHS z): (D, 2H) weights + (1, 2H) t-cols / biases.
    Wcat = jnp.concatenate([W1[:, 1:].T, V1[:, 1:].T], axis=1)
    wtcat = jnp.concatenate([W1[:, 0:1].T, V1[:, 0:1].T], axis=1)
    bcat = jnp.concatenate([b1[None, :], c1[None, :]], axis=1)

    flat = [Wcat, wtcat, bcat]
    for W, b in hn1_layers[1:]:
        flat += [W.T, b[None, :]]
    Wout, bout = hn1_out
    flat += [Wout.T, Wout, bout[None, :]]
    for V, c in hn2_layers[1:]:
        flat += [V.T, c[None, :]]
    Vout, cout = hn2_out
    flat += [Vout.T, cout[None, :]]

    t_arr = jnp.full((1, 1), t, dtype=jnp.float32)

    # Batch grid: large batches pipeline over (TB, D) tiles and shard across cores.
    TB = 256 if (B % 256 == 0) else B
    grid = (B // TB,)

    kernel = functools.partial(_uot_kernel, n_hiddens)
    in_specs = ([pl.BlockSpec(memory_space=pltpu.MemorySpace.SMEM),        # t scalar
                 pl.BlockSpec((TB, D), lambda i: (i, 0))]                  # z batch tile
                + [pl.BlockSpec(memory_space=pltpu.MemorySpace.VMEM)] * len(flat))
    out_specs = pl.BlockSpec((TB, D + 2), lambda i: (i, 0))
    out_shape = jax.ShapeDtypeStruct((B, D + 2), jnp.float32)

    packed = pl.pallas_call(
        kernel,
        grid=grid,
        out_shape=out_shape,
        in_specs=in_specs,
        out_specs=out_specs,
        compiler_params=pltpu.CompilerParams(dimension_semantics=("parallel",)),
    )(t_arr, z, *flat)

    dz_dt = packed[:, :D]
    g = packed[:, D:D + 1]
    dlogp = packed[:, D + 1:D + 2]
    return dz_dt, g, dlogp


# ------------------------- reference (plain JAX, full precision) -------------------------

def _ref_mlp(t, z, layers, out):
    x = jnp.concatenate([jnp.full((z.shape[0], 1), t, jnp.float32), z], axis=1)
    for W, b in layers:
        x = jnp.tanh(jnp.matmul(x, W.T, precision=jax.lax.Precision.HIGHEST) + b)
    Wout, bout = out
    return jnp.matmul(x, Wout.T, precision=jax.lax.Precision.HIGHEST) + bout


def ref_uot(t, z, hn1_layers, hn1_out, hn2_layers, hn2_out):
    dz_dt = _ref_mlp(t, z, hn1_layers, hn1_out)
    g = _ref_mlp(t, z, hn2_layers, hn2_out)

    def single(zi):
        return _ref_mlp(t, zi[None, :], hn1_layers, hn1_out)[0]

    J = jax.vmap(jax.jacfwd(single))(z)                      # (B, D, D)
    trace = jnp.trace(J, axis1=-2, axis2=-1)[:, None]        # (B, 1)
    return dz_dt, g, g - trace


# ------------------------------- main -------------------------------

def _linear_params(key, fan_in, fan_out):
    k1, k2 = jax.random.split(key)
    bound = 1.0 / jnp.sqrt(jnp.float32(fan_in))
    W = jax.random.uniform(k1, (fan_out, fan_in), jnp.float32, -bound, bound)
    b = jax.random.uniform(k2, (fan_out,), jnp.float32, -bound, bound)
    return W, b


if __name__ == "__main__":
    B, D, H, n_hiddens = 8, 4, 32, 2
    t_val = 0.5

    key = jax.random.PRNGKey(0)
    keys = jax.random.split(key, 16)
    ki = iter(keys)

    z = jax.random.normal(next(ki), (B, D), jnp.float32)

    # HyperNetwork1: [D+1 -> H] (+ Tanh), [H -> H]*(n_hiddens-1) (+ Tanh), out [H -> D]
    hn1_layers = [_linear_params(next(ki), D + 1, H)]
    for _ in range(n_hiddens - 1):
        hn1_layers.append(_linear_params(next(ki), H, H))
    hn1_out = _linear_params(next(ki), H, D)

    # HyperNetwork2: [D+1 -> H], [H -> H], [H -> H] (each + Tanh), out [H -> 1]
    hn2_layers = [_linear_params(next(ki), D + 1, H),
                  _linear_params(next(ki), H, H),
                  _linear_params(next(ki), H, H)]
    hn2_out = _linear_params(next(ki), H, 1)

    dz_dt, g, dlogp = uot_forward(t_val, z, hn1_layers, hn1_out,
                                  hn2_layers, hn2_out, n_hiddens)
    jax.block_until_ready((dz_dt, g, dlogp))

    r_dz, r_g, r_dlogp = ref_uot(t_val, z, hn1_layers, hn1_out, hn2_layers, hn2_out)
    assert dz_dt.shape == (B, D) and g.shape == (B, 1) and dlogp.shape == (B, 1)
    # kernel uses default (single bf16-pass) MXU matmuls; reference is full f32
    assert jnp.allclose(dz_dt, r_dz, rtol=1e-2, atol=1e-2)
    assert jnp.allclose(g, r_g, rtol=1e-2, atol=1e-2)
    assert jnp.allclose(dlogp, r_dlogp, rtol=1e-2, atol=1e-2)

    print("KERNEL_OK")
</pallas_src>

<mosaic_0001>
module attributes {stable_mosaic.version = 11 : i64} {
  func.func @_uot_kernel(%arg0: i32, %arg1: memref<1x1xf32, #tpu.memory_space<smem>>, %arg2: memref<8x4xf32, #tpu.memory_space<vmem>>, %arg3: memref<4x64xf32, #tpu.memory_space<vmem>>, %arg4: memref<1x64xf32, #tpu.memory_space<vmem>>, %arg5: memref<1x64xf32, #tpu.memory_space<vmem>>, %arg6: memref<32x32xf32, #tpu.memory_space<vmem>>, %arg7: memref<1x32xf32, #tpu.memory_space<vmem>>, %arg8: memref<32x4xf32, #tpu.memory_space<vmem>>, %arg9: memref<4x32xf32, #tpu.memory_space<vmem>>, %arg10: memref<1x4xf32, #tpu.memory_space<vmem>>, %arg11: memref<32x32xf32, #tpu.memory_space<vmem>>, %arg12: memref<1x32xf32, #tpu.memory_space<vmem>>, %arg13: memref<32x32xf32, #tpu.memory_space<vmem>>, %arg14: memref<1x32xf32, #tpu.memory_space<vmem>>, %arg15: memref<32x1xf32, #tpu.memory_space<vmem>>, %arg16: memref<1x1xf32, #tpu.memory_space<vmem>>, %arg17: memref<8x6xf32, #tpu.memory_space<vmem>>) attributes {dimension_semantics = [#tpu.dimension_semantics<parallel>], iteration_bounds = array<i64: 1>, scalar_prefetch = 0 : i64, scratch_operands = 0 : i64, tpu.core_type = #tpu.core_type<tc>, window_params = [{transform_indices = @transform_0, window_bounds = array<i64: 1, 1>}, {transform_indices = @transform_1, window_bounds = array<i64: 8, 4>}, {pipeline_mode = #tpu.pipeline_mode<synchronous>, transform_indices = @transform_2, window_bounds = array<i64: 4, 64>}, {pipeline_mode = #tpu.pipeline_mode<synchronous>, transform_indices = @transform_3, window_bounds = array<i64: 1, 64>}, {pipeline_mode = #tpu.pipeline_mode<synchronous>, transform_indices = @transform_4, window_bounds = array<i64: 1, 64>}, {pipeline_mode = #tpu.pipeline_mode<synchronous>, transform_indices = @transform_5, window_bounds = array<i64: 32, 32>}, {pipeline_mode = #tpu.pipeline_mode<synchronous>, transform_indices = @transform_6, window_bounds = array<i64: 1, 32>}, {pipeline_mode = #tpu.pipeline_mode<synchronous>, transform_indices = @transform_7, window_bounds = array<i64: 32, 4>}, {pipeline_mode = #tpu.pipeline_mode<synchronous>, transform_indices = @transform_8, window_bounds = array<i64: 4, 32>}, {pipeline_mode = #tpu.pipeline_mode<synchronous>, transform_indices = @transform_9, window_bounds = array<i64: 1, 4>}, {pipeline_mode = #tpu.pipeline_mode<synchronous>, transform_indices = @transform_10, window_bounds = array<i64: 32, 32>}, {pipeline_mode = #tpu.pipeline_mode<synchronous>, transform_indices = @transform_11, window_bounds = array<i64: 1, 32>}, {pipeline_mode = #tpu.pipeline_mode<synchronous>, transform_indices = @transform_12, window_bounds = array<i64: 32, 32>}, {pipeline_mode = #tpu.pipeline_mode<synchronous>, transform_indices = @transform_13, window_bounds = array<i64: 1, 32>}, {pipeline_mode = #tpu.pipeline_mode<synchronous>, transform_indices = @transform_14, window_bounds = array<i64: 32, 1>}, {pipeline_mode = #tpu.pipeline_mode<synchronous>, transform_indices = @transform_15, window_bounds = array<i64: 1, 1>}, {transform_indices = @transform_16, window_bounds = array<i64: 8, 6>}]} {
    %c0 = arith.constant 0 : index
    %c0_0 = arith.constant 0 : index
    %0 = memref.load %arg1[%c0, %c0_0] : memref<1x1xf32, #tpu.memory_space<smem>>
    %c0_1 = arith.constant 0 : index
    %c0_2 = arith.constant 0 : index
    %1 = vector.load %arg2[%c0_1, %c0_2] : memref<8x4xf32, #tpu.memory_space<vmem>>, vector<8x4xf32>
    %c0_3 = arith.constant 0 : index
    %c0_4 = arith.constant 0 : index
    %2 = vector.load %arg3[%c0_3, %c0_4] : memref<4x64xf32, #tpu.memory_space<vmem>>, vector<4x64xf32>
    %c0_5 = arith.constant 0 : index
    %c0_6 = arith.constant 0 : index
    %3 = vector.load %arg4[%c0_5, %c0_6] : memref<1x64xf32, #tpu.memory_space<vmem>>, vector<1x64xf32>
    %c0_7 = arith.constant 0 : index
    %c0_8 = arith.constant 0 : index
    %4 = vector.load %arg5[%c0_7, %c0_8] : memref<1x64xf32, #tpu.memory_space<vmem>>, vector<1x64xf32>
    %c0_9 = arith.constant 0 : index
    %c0_10 = arith.constant 0 : index
    %5 = vector.load %arg6[%c0_9, %c0_10] : memref<32x32xf32, #tpu.memory_space<vmem>>, vector<32x32xf32>
    %c0_11 = arith.constant 0 : index
    %c0_12 = arith.constant 0 : index
    %6 = vector.load %arg7[%c0_11, %c0_12] : memref<1x32xf32, #tpu.memory_space<vmem>>, vector<1x32xf32>
    %c0_13 = arith.constant 0 : index
    %c0_14 = arith.constant 0 : index
    %7 = vector.load %arg8[%c0_13, %c0_14] : memref<32x4xf32, #tpu.memory_space<vmem>>, vector<32x4xf32>
    %c0_15 = arith.constant 0 : index
    %c0_16 = arith.constant 0 : index
    %8 = vector.load %arg9[%c0_15, %c0_16] : memref<4x32xf32, #tpu.memory_space<vmem>>, vector<4x32xf32>
    %c0_17 = arith.constant 0 : index
    %c0_18 = arith.constant 0 : index
    %9 = vector.load %arg10[%c0_17, %c0_18] : memref<1x4xf32, #tpu.memory_space<vmem>>, vector<1x4xf32>
    %c0_19 = arith.constant 0 : index
    %c0_20 = arith.constant 0 : index
    %10 = vector.load %arg11[%c0_19, %c0_20] : memref<32x32xf32, #tpu.memory_space<vmem>>, vector<32x32xf32>
    %c0_21 = arith.constant 0 : index
    %c0_22 = arith.constant 0 : index
    %11 = vector.load %arg12[%c0_21, %c0_22] : memref<1x32xf32, #tpu.memory_space<vmem>>, vector<1x32xf32>
    %c0_23 = arith.constant 0 : index
    %c0_24 = arith.constant 0 : index
    %12 = vector.load %arg13[%c0_23, %c0_24] : memref<32x32xf32, #tpu.memory_space<vmem>>, vector<32x32xf32>
    %c0_25 = arith.constant 0 : index
    %c0_26 = arith.constant 0 : index
    %13 = vector.load %arg14[%c0_25, %c0_26] : memref<1x32xf32, #tpu.memory_space<vmem>>, vector<1x32xf32>
    %c0_27 = arith.constant 0 : index
    %c0_28 = arith.constant 0 : index
    %14 = vector.load %arg15[%c0_27, %c0_28] : memref<32x1xf32, #tpu.memory_space<vmem>>, vector<32x1xf32>
    %c0_29 = arith.constant 0 : index
    %c0_30 = arith.constant 0 : index
    %15 = vector.load %arg16[%c0_29, %c0_30] : memref<1x1xf32, #tpu.memory_space<vmem>>, vector<1x1xf32>
    %cst = arith.constant dense<0.000000e+00> : vector<8x64xf32>
    %16 = tpu.matmul %1, %2, %cst {dimension_numbers = #tpu.dot_dimension_numbers<[1], [0], [0], [1], [0, 0, 1, 1], [], []>} : vector<8x4xf32>, vector<4x64xf32>, vector<8x64xf32> -> vector<8x64xf32>
    %17 = vector.broadcast %0 : f32 to vector<1x64xf32>
    %18 = arith.mulf %17, %3 : vector<1x64xf32>
    %19 = vector.broadcast %18 : vector<1x64xf32> to vector<8x64xf32>
    %20 = arith.addf %16, %19 : vector<8x64xf32>
    %21 = vector.broadcast %4 : vector<1x64xf32> to vector<8x64xf32>
    %22 = arith.addf %20, %21 : vector<8x64xf32>
    %23 = math.tanh %22 : vector<8x64xf32>
    %24 = vector.extract_strided_slice %23 {offsets = [0, 0], sizes = [8, 32], strides = [1, 1]} : vector<8x64xf32> to vector<8x32xf32>
    %25 = vector.extract_strided_slice %23 {offsets = [0, 32], sizes = [8, 32], strides = [1, 1]} : vector<8x64xf32> to vector<8x32xf32>
    %26 = arith.mulf %24, %24 : vector<8x32xf32>
    %cst_31 = arith.constant 1.000000e+00 : f32
    %27 = vector.broadcast %cst_31 : f32 to vector<8x32xf32>
    %28 = arith.subf %27, %26 : vector<8x32xf32>
    %cst_32 = arith.constant dense<0.000000e+00> : vector<8x32xf32>
    %29 = tpu.matmul %24, %5, %cst_32 {dimension_numbers = #tpu.dot_dimension_numbers<[1], [0], [0], [1], [0, 0, 1, 1], [], []>} : vector<8x32xf32>, vector<32x32xf32>, vector<8x32xf32> -> vector<8x32xf32>
    %30 = vector.broadcast %6 : vector<1x32xf32> to vector<8x32xf32>
    %31 = arith.addf %29, %30 : vector<8x32xf32>
    %32 = math.tanh %31 : vector<8x32xf32>
    %33 = arith.mulf %32, %32 : vector<8x32xf32>
    %cst_33 = arith.constant 1.000000e+00 : f32
    %34 = vector.broadcast %cst_33 : f32 to vector<8x32xf32>
    %35 = arith.subf %34, %33 : vector<8x32xf32>
    %cst_34 = arith.constant dense<0.000000e+00> : vector<8x4xf32>
    %36 = tpu.matmul %32, %7, %cst_34 {dimension_numbers = #tpu.dot_dimension_numbers<[1], [0], [0], [1], [0, 0, 1, 1], [], []>} : vector<8x32xf32>, vector<32x4xf32>, vector<8x4xf32> -> vector<8x4xf32>
    %37 = vector.broadcast %9 : vector<1x4xf32> to vector<8x4xf32>
    %38 = arith.addf %36, %37 : vector<8x4xf32>
    %39 = vector.extract_strided_slice %2 {offsets = [0, 0], sizes = [4, 32], strides = [1, 1]} : vector<4x64xf32> to vector<4x32xf32>
    %40 = vector.extract_strided_slice %39 {offsets = [0, 0], sizes = [1, 32], strides = [1, 1]} : vector<4x32xf32> to vector<1x32xf32>
    %41 = vector.broadcast %40 : vector<1x32xf32> to vector<8x32xf32>
    %42 = arith.mulf %28, %41 : vector<8x32xf32>
    %43 = vector.extract_strided_slice %39 {offsets = [1, 0], sizes = [1, 32], strides = [1, 1]} : vector<4x32xf32> to vector<1x32xf32>
    %44 = vector.broadcast %43 : vector<1x32xf32> to vector<8x32xf32>
    %45 = arith.mulf %28, %44 : vector<8x32xf32>
    %46 = vector.extract_strided_slice %39 {offsets = [2, 0], sizes = [1, 32], strides = [1, 1]} : vector<4x32xf32> to vector<1x32xf32>
    %47 = vector.broadcast %46 : vector<1x32xf32> to vector<8x32xf32>
    %48 = arith.mulf %28, %47 : vector<8x32xf32>
    %49 = vector.extract_strided_slice %39 {offsets = [3, 0], sizes = [1, 32], strides = [1, 1]} : vector<4x32xf32> to vector<1x32xf32>
    %50 = vector.broadcast %49 : vector<1x32xf32> to vector<8x32xf32>
    %51 = arith.mulf %28, %50 : vector<8x32xf32>
    %52 = tpu.concatenate %42, %45, %48, %51 in 0 : vector<8x32xf32>, vector<8x32xf32>, vector<8x32xf32>, vector<8x32xf32> -> vector<32x32xf32>
    %53 = tpu.concatenate %35, %35, %35, %35 in 0 : vector<8x32xf32>, vector<8x32xf32>, vector<8x32xf32>, vector<8x32xf32> -> vector<32x32xf32>
    %cst_35 = arith.constant dense<0.000000e+00> : vector<32x32xf32>
    %54 = tpu.matmul %52, %5, %cst_35 {dimension_numbers = #tpu.dot_dimension_numbers<[1], [0], [0], [1], [0, 0, 1, 1], [], []>} : vector<32x32xf32>, vector<32x32xf32>, vector<32x32xf32> -> vector<32x32xf32>
    %55 = arith.mulf %53, %54 : vector<32x32xf32>
    %56 = vector.extract_strided_slice %8 {offsets = [0, 0], sizes = [1, 32], strides = [1, 1]} : vector<4x32xf32> to vector<1x32xf32>
    %57 = vector.shape_cast %56 : vector<1x32xf32> to vector<1x32xf32>
    %58 = vector.broadcast %57 : vector<1x32xf32> to vector<8x32xf32>
    %59 = vector.extract_strided_slice %8 {offsets = [1, 0], sizes = [1, 32], strides = [1, 1]} : vector<4x32xf32> to vector<1x32xf32>
    %60 = vector.shape_cast %59 : vector<1x32xf32> to vector<1x32xf32>
    %61 = vector.broadcast %60 : vector<1x32xf32> to vector<8x32xf32>
    %62 = vector.extract_strided_slice %8 {offsets = [2, 0], sizes = [1, 32], strides = [1, 1]} : vector<4x32xf32> to vector<1x32xf32>
    %63 = vector.shape_cast %62 : vector<1x32xf32> to vector<1x32xf32>
    %64 = vector.broadcast %63 : vector<1x32xf32> to vector<8x32xf32>
    %65 = vector.extract_strided_slice %8 {offsets = [3, 0], sizes = [1, 32], strides = [1, 1]} : vector<4x32xf32> to vector<1x32xf32>
    %66 = vector.shape_cast %65 : vector<1x32xf32> to vector<1x32xf32>
    %67 = vector.broadcast %66 : vector<1x32xf32> to vector<8x32xf32>
    %68 = tpu.concatenate %58, %61, %64, %67 in 0 : vector<8x32xf32>, vector<8x32xf32>, vector<8x32xf32>, vector<8x32xf32> -> vector<32x32xf32>
    %69 = arith.mulf %55, %68 : vector<32x32xf32>
    %cst_36 = arith.constant dense<0.000000e+00> : vector<32xf32>
    %70 = vector.multi_reduction <add>, %69, %cst_36 [1] : vector<32x32xf32> to vector<32xf32>
    %71 = vector.shape_cast %70 : vector<32xf32> to vector<32x1xf32>
    %72 = vector.extract_strided_slice %71 {offsets = [0, 0], sizes = [8, 1], strides = [1, 1]} : vector<32x1xf32> to vector<8x1xf32>
    %73 = vector.extract_strided_slice %71 {offsets = [8, 0], sizes = [8, 1], strides = [1, 1]} : vector<32x1xf32> to vector<8x1xf32>
    %74 = arith.addf %72, %73 : vector<8x1xf32>
    %75 = vector.extract_strided_slice %71 {offsets = [16, 0], sizes = [8, 1], strides = [1, 1]} : vector<32x1xf32> to vector<8x1xf32>
    %76 = arith.addf %74, %75 : vector<8x1xf32>
    %77 = vector.extract_strided_slice %71 {offsets = [24, 0], sizes = [8, 1], strides = [1, 1]} : vector<32x1xf32> to vector<8x1xf32>
    %78 = arith.addf %76, %77 : vector<8x1xf32>
    %cst_37 = arith.constant dense<0.000000e+00> : vector<8x32xf32>
    %79 = tpu.matmul %25, %10, %cst_37 {dimension_numbers = #tpu.dot_dimension_numbers<[1], [0], [0], [1], [0, 0, 1, 1], [], []>} : vector<8x32xf32>, vector<32x32xf32>, vector<8x32xf32> -> vector<8x32xf32>
    %80 = vector.broadcast %11 : vector<1x32xf32> to vector<8x32xf32>
    %81 = arith.addf %79, %80 : vector<8x32xf32>
    %82 = math.tanh %81 : vector<8x32xf32>
    %cst_38 = arith.constant dense<0.000000e+00> : vector<8x32xf32>
    %83 = tpu.matmul %82, %12, %cst_38 {dimension_numbers = #tpu.dot_dimension_numbers<[1], [0], [0], [1], [0, 0, 1, 1], [], []>} : vector<8x32xf32>, vector<32x32xf32>, vector<8x32xf32> -> vector<8x32xf32>
    %84 = vector.broadcast %13 : vector<1x32xf32> to vector<8x32xf32>
    %85 = arith.addf %83, %84 : vector<8x32xf32>
    %86 = math.tanh %85 : vector<8x32xf32>
    %cst_39 = arith.constant dense<0.000000e+00> : vector<8x1xf32>
    %87 = tpu.matmul %86, %14, %cst_39 {dimension_numbers = #tpu.dot_dimension_numbers<[1], [0], [0], [1], [0, 0, 1, 1], [], []>} : vector<8x32xf32>, vector<32x1xf32>, vector<8x1xf32> -> vector<8x1xf32>
    %88 = vector.broadcast %15 : vector<1x1xf32> to vector<8x1xf32>
    %89 = arith.addf %87, %88 : vector<8x1xf32>
    %90 = arith.subf %89, %78 : vector<8x1xf32>
    %91 = tpu.concatenate %38, %89, %90 in 1 : vector<8x4xf32>, vector<8x1xf32>, vector<8x1xf32> -> vector<8x6xf32>
    %c0_40 = arith.constant 0 : index
    %c0_41 = arith.constant 0 : index
    %92 = vector.load %arg17[%c0_40, %c0_41] : memref<8x6xf32, #tpu.memory_space<vmem>>, vector<8x6xf32>
    tpu.vector_store %arg17[%c0_40, %c0_41], %91 {strides = array<i32>} : memref<8x6xf32, #tpu.memory_space<vmem>>, vector<8x6xf32>,
    return
  }
  func.func @transform_0(%arg0: i32) -> (i32, i32) {
    %c0_i32 = arith.constant 0 : i32
    %c0_i32_0 = arith.constant 0 : i32
    %c0_i32_1 = arith.constant 0 : i32
    return %c0_i32, %c0_i32_0 : i32, i32
  }
  func.func @transform_1(%arg0: i32) -> (i32, i32) {
    %c0_i32 = arith.constant 0 : i32
    %c0_i32_0 = arith.constant 0 : i32
    return %arg0, %c0_i32 : i32, i32
  }
  func.func @transform_2(%arg0: i32) -> (i32, i32) {
    %c0_i32 = arith.constant 0 : i32
    %c0_i32_0 = arith.constant 0 : i32
    %c0_i32_1 = arith.constant 0 : i32
    return %c0_i32, %c0_i32_0 : i32, i32
  }
  func.func @transform_3(%arg0: i32) -> (i32, i32) {
    %c0_i32 = arith.constant 0 : i32
    %c0_i32_0 = arith.constant 0 : i32
    %c0_i32_1 = arith.constant 0 : i32
    return %c0_i32, %c0_i32_0 : i32, i32
  }
  func.func @transform_4(%arg0: i32) -> (i32, i32) {
    %c0_i32 = arith.constant 0 : i32
    %c0_i32_0 = arith.constant 0 : i32
    %c0_i32_1 = arith.constant 0 : i32
    return %c0_i32, %c0_i32_0 : i32, i32
  }
  func.func @transform_5(%arg0: i32) -> (i32, i32) {
    %c0_i32 = arith.constant 0 : i32
    %c0_i32_0 = arith.constant 0 : i32
    %c0_i32_1 = arith.constant 0 : i32
    return %c0_i32, %c0_i32_0 : i32, i32
  }
  func.func @transform_6(%arg0: i32) -> (i32, i32) {
    %c0_i32 = arith.constant 0 : i32
    %c0_i32_0 = arith.constant 0 : i32
    %c0_i32_1 = arith.constant 0 : i32
    return %c0_i32, %c0_i32_0 : i32, i32
  }
  func.func @transform_7(%arg0: i32) -> (i32, i32) {
    %c0_i32 = arith.constant 0 : i32
    %c0_i32_0 = arith.constant 0 : i32
    %c0_i32_1 = arith.constant 0 : i32
    return %c0_i32, %c0_i32_0 : i32, i32
  }
  func.func @transform_8(%arg0: i32) -> (i32, i32) {
    %c0_i32 = arith.constant 0 : i32
    %c0_i32_0 = arith.constant 0 : i32
    %c0_i32_1 = arith.constant 0 : i32
    return %c0_i32, %c0_i32_0 : i32, i32
  }
  func.func @transform_9(%arg0: i32) -> (i32, i32) {
    %c0_i32 = arith.constant 0 : i32
    %c0_i32_0 = arith.constant 0 : i32
    %c0_i32_1 = arith.constant 0 : i32
    return %c0_i32, %c0_i32_0 : i32, i32
  }
  func.func @transform_10(%arg0: i32) -> (i32, i32) {
    %c0_i32 = arith.constant 0 : i32
    %c0_i32_0 = arith.constant 0 : i32
    %c0_i32_1 = arith.constant 0 : i32
    return %c0_i32, %c0_i32_0 : i32, i32
  }
  func.func @transform_11(%arg0: i32) -> (i32, i32) {
    %c0_i32 = arith.constant 0 : i32
    %c0_i32_0 = arith.constant 0 : i32
    %c0_i32_1 = arith.constant 0 : i32
    return %c0_i32, %c0_i32_0 : i32, i32
  }
  func.func @transform_12(%arg0: i32) -> (i32, i32) {
    %c0_i32 = arith.constant 0 : i32
    %c0_i32_0 = arith.constant 0 : i32
    %c0_i32_1 = arith.constant 0 : i32
    return %c0_i32, %c0_i32_0 : i32, i32
  }
  func.func @transform_13(%arg0: i32) -> (i32, i32) {
    %c0_i32 = arith.constant 0 : i32
    %c0_i32_0 = arith.constant 0 : i32
    %c0_i32_1 = arith.constant 0 : i32
    return %c0_i32, %c0_i32_0 : i32, i32
  }
  func.func @transform_14(%arg0: i32) -> (i32, i32) {
    %c0_i32 = arith.constant 0 : i32
    %c0_i32_0 = arith.constant 0 : i32
    %c0_i32_1 = arith.constant 0 : i32
    return %c0_i32, %c0_i32_0 : i32, i32
  }
  func.func @transform_15(%arg0: i32) -> (i32, i32) {
    %c0_i32 = arith.constant 0 : i32
    %c0_i32_0 = arith.constant 0 : i32
    %c0_i32_1 = arith.constant 0 : i32
    return %c0_i32, %c0_i32_0 : i32, i32
  }
  func.func @transform_16(%arg0: i32) -> (i32, i32) {
    %c0_i32 = arith.constant 0 : i32
    %c0_i32_0 = arith.constant 0 : i32
    return %arg0, %c0_i32 : i32, i32
  }
}

</mosaic_0001>

<llo_original>
// kernel: tpu_custom_call.1
$region0: #{tpu_custom_call.1}
  #allocation0 [shape = 'u32[]', space=smem, size = 0x4, offset = 0x4, fixed_abs, tag = 'smem constant byte address 0x4 - core index']
  #allocation1 [shape = 'u32[144,128]{1,0:T(1,128)}', space=vmem, size = 0x12000, scoped, tag = 'internal scratch']
  #allocation2 [shape = 'f32[1,1]{1,0:T(1,128)S(6)}', space=smem, size = 0x200, scoped, tag = 'scoped memory for tpu_custom_call.1']
  #allocation3 [shape = 'f32[1,1]{1,0:T(1,128)S(1)}', space=vmem, size = 0x200, scoped, tag = 'scoped memory for tpu_custom_call.1']
  %s0 = inlined_call_operand.<no memory space> [shape: f32[1,1], index: 0, kind: input, shape index: {}]
  %s1 = inlined_call_operand.vmem [shape: f32[8,4], index: 1, kind: input, shape index: {}]
  %s2 = inlined_call_operand.hbm [shape: f32[4,64], index: 2, kind: input, shape index: {}]
  %s3 = inlined_call_operand.hbm [shape: f32[1,64], index: 3, kind: input, shape index: {}]
  %s4 = inlined_call_operand.vmem [shape: f32[1,64], index: 4, kind: input, shape index: {}]
  %s5 = inlined_call_operand.vmem [shape: f32[32,32], index: 5, kind: input, shape index: {}]
  %s6 = inlined_call_operand.vmem [shape: f32[1,32], index: 6, kind: input, shape index: {}]
  %s7 = inlined_call_operand.vmem [shape: f32[32,4], index: 7, kind: input, shape index: {}]
  %s8 = inlined_call_operand.vmem [shape: f32[4,32], index: 8, kind: input, shape index: {}]
  %s9 = inlined_call_operand.vmem [shape: f32[1,4], index: 9, kind: input, shape index: {}]
  %s10 = inlined_call_operand.vmem [shape: f32[32,32], index: 10, kind: input, shape index: {}]
  %s11 = inlined_call_operand.vmem [shape: f32[1,32], index: 11, kind: input, shape index: {}]
  %s12 = inlined_call_operand.vmem [shape: f32[32,32], index: 12, kind: input, shape index: {}]
  %s13 = inlined_call_operand.vmem [shape: f32[1,32], index: 13, kind: input, shape index: {}]
  %s14 = inlined_call_operand.vmem [shape: f32[32,1], index: 14, kind: input, shape index: {}]
  %s15 = inlined_call_operand.<no memory space> [shape: f32[1,1], index: 15, kind: input, shape index: {}]
  %s16 = inlined_call_operand.hbm [shape: f32[8,6], index: 16, kind: output, shape index: {}]
  %s17 = sld [smem:[#allocation0]]
  $region82: #{tpu_custom_call.1} parent=0
    _
  %s19 = ssub.s32 1, %s17
  %s20 = scalar_select 0, %s19, %s17
  %21 = sst [smem:[#allocation2]] %s0
  %v22 = vstv %s15
  %23 = vst [vmem:[#allocation3] sm:$0x1] %v22
  $region1: #{tpu_custom_call.1} parent=0
    #allocation4 [shape = 'u8[2048]{0}', space=vmem, size = 0x800, scoped, tag = 'input window, operand 2, single buffered']
    #allocation5 [shape = 's32[1]{0}', space=sflag, size = 0x4, scoped, tag = 'scoped memory for tpu_custom_call.1']
    #allocation6 [shape = 's32[1]{0}', space=sflag, size = 0x4, scoped, tag = 'scoped memory for tpu_custom_call.1']
    #allocation7 [shape = 'u8[512]{0}', space=vmem, size = 0x400, scoped, tag = 'input window, operand 3, single buffered']
    #allocation8 [shape = 's32[1]{0}', space=sflag, size = 0x4, scoped, tag = 'scoped memory for tpu_custom_call.1']
    #allocation9 [shape = 'u8[4096]{0}', space=vmem, size = 0x1000, scoped, tag = 'output window, operand 0, single buffered']
    %24 = vsyncpa [#allocation5], 0
    %25 = vsyncpa [#allocation8], 0
    %26 = vsyncpa [#allocation6], 0
    // Predicated region
    $region2: #{tpu_custom_call.1} parent=1 // pred_check
      _
    $region3: #{tpu_custom_call.1} parent=1 // pred_check_branch
      %28 = sbr.rel (0) target = $region5
    $region4: #{tpu_custom_call.1} parent=1 // pred_region
      _
    $region5: #{tpu_custom_call.1} parent=1 // pred_fallthru
      _
    // Predicated region
    $region6: #{tpu_custom_call.1} parent=1 // pred_check
      _
    $region7: #{tpu_custom_call.1} parent=1 // pred_check_branch
      %30 = sbr.rel (0) target = $region9
    $region8: #{tpu_custom_call.1} parent=1 // pred_region
      _
    $region9: #{tpu_custom_call.1} parent=1 // pred_fallthru
      _
    // Predicated region
    $region10: #{tpu_custom_call.1} parent=1 // pred_check
      _
    $region11: #{tpu_custom_call.1} parent=1 // pred_check_branch
      %32 = sbr.rel (0) target = $region13
    $region12: #{tpu_custom_call.1} parent=1 // pred_region
      %s34 = ssub.s32 64, 64
      %35 = vsyncadd [#allocation5], %s34
      %s37 = sshll.u32 [#allocation4], 4
      %s38 = int_to_ptr.vmem [resolvable:$true] %s37
      %40 = dma.hbm_to_vmem [thread:$0]  %s2, 64, %s38, [#allocation5]
    $region13: #{tpu_custom_call.1} parent=1 // pred_fallthru
      _
    // Predicated region
    $region14: #{tpu_custom_call.1} parent=1 // pred_check
      _
    $region15: #{tpu_custom_call.1} parent=1 // pred_check_branch
      %42 = sbr.rel (0) target = $region17
    $region16: #{tpu_custom_call.1} parent=1 // pred_region
      %s44 = ssub.s32 16, 16
      %45 = vsyncadd [#allocation8], %s44
      %s47 = sshll.u32 [#allocation7], 4
      %s48 = int_to_ptr.vmem [resolvable:$true] %s47
      %50 = dma.hbm_to_vmem [thread:$0]  %s3, 16, %s48, [#allocation8]
    $region17: #{tpu_custom_call.1} parent=1 // pred_fallthru
      _
    // Predicated region
    $region18: #{tpu_custom_call.1} parent=1 // pred_check
      _
    $region19: #{tpu_custom_call.1} parent=1 // pred_check_branch
      %52 = sbr.rel (0) target = $region21
    $region20: #{tpu_custom_call.1} parent=1 // pred_region
      _
    $region21: #{tpu_custom_call.1} parent=1 // pred_fallthru
      _
    // Predicated region
    $region22: #{tpu_custom_call.1} parent=1 // pred_check
      _
    $region23: #{tpu_custom_call.1} parent=1 // pred_check_branch
      %54 = sbr.rel (0) target = $region25
    $region24: #{tpu_custom_call.1} parent=1 // pred_region
      _
    $region25: #{tpu_custom_call.1} parent=1 // pred_fallthru
      _
    // Predicated region
    $region26: #{tpu_custom_call.1} parent=1 // pred_check
      _
    $region27: #{tpu_custom_call.1} parent=1 // pred_check_branch
      %56 = sbr.rel (0) target = $region29
    $region28: #{tpu_custom_call.1} parent=1 // pred_region
      _
    $region29: #{tpu_custom_call.1} parent=1 // pred_fallthru
      _
    // Predicated region
    $region30: #{tpu_custom_call.1} parent=1 // pred_check
      _
    $region31: #{tpu_custom_call.1} parent=1 // pred_check_branch
      %58 = sbr.rel (0) target = $region33
    $region32: #{tpu_custom_call.1} parent=1 // pred_region
      _
    $region33: #{tpu_custom_call.1} parent=1 // pred_fallthru
      _
    // Predicated region
    $region34: #{tpu_custom_call.1} parent=1 // pred_check
      _
    $region35: #{tpu_custom_call.1} parent=1 // pred_check_branch
      %60 = sbr.rel (0) target = $region37
    $region36: #{tpu_custom_call.1} parent=1 // pred_region
      _
    $region37: #{tpu_custom_call.1} parent=1 // pred_fallthru
      _
    // Predicated region
    $region38: #{tpu_custom_call.1} parent=1 // pred_check
      _
    $region39: #{tpu_custom_call.1} parent=1 // pred_check_branch
      %62 = sbr.rel (0) target = $region41
    $region40: #{tpu_custom_call.1} parent=1 // pred_region
      _
    $region41: #{tpu_custom_call.1} parent=1 // pred_fallthru
      _
    // Predicated region
    $region42: #{tpu_custom_call.1} parent=1 // pred_check
      _
    $region43: #{tpu_custom_call.1} parent=1 // pred_check_branch
      %64 = sbr.rel (0) target = $region45
    $region44: #{tpu_custom_call.1} parent=1 // pred_region
      _
    $region45: #{tpu_custom_call.1} parent=1 // pred_fallthru
      _
    // Predicated region
    $region46: #{tpu_custom_call.1} parent=1 // pred_check
      _
    $region47: #{tpu_custom_call.1} parent=1 // pred_check_branch
      %66 = sbr.rel (0) target = $region49
    $region48: #{tpu_custom_call.1} parent=1 // pred_region
      _
    $region49: #{tpu_custom_call.1} parent=1 // pred_fallthru
      _
    // Predicated region
    $region50: #{tpu_custom_call.1} parent=1 // pred_check
      _
    $region51: #{tpu_custom_call.1} parent=1 // pred_check_branch
      %68 = sbr.rel (0) target = $region53
    $region52: #{tpu_custom_call.1} parent=1 // pred_region
      _
    $region53: #{tpu_custom_call.1} parent=1 // pred_fallthru
      _
    // Predicated region
    $region54: #{tpu_custom_call.1} parent=1 // pred_check
      _
    $region55: #{tpu_custom_call.1} parent=1 // pred_check_branch
      %70 = sbr.rel (0) target = $region57
    $region56: #{tpu_custom_call.1} parent=1 // pred_region
      _
    $region57: #{tpu_custom_call.1} parent=1 // pred_fallthru
      _
    // Predicated region
    $region58: #{tpu_custom_call.1} parent=1 // pred_check
      _
    $region59: #{tpu_custom_call.1} parent=1 // pred_check_branch
      %72 = sbr.rel (0) target = $region61
    $region60: #{tpu_custom_call.1} parent=1 // pred_region
      _
    $region61: #{tpu_custom_call.1} parent=1 // pred_fallthru
      _
    // Predicated region
    $region62: #{tpu_custom_call.1} parent=1 // pred_check
      _
    $region63: #{tpu_custom_call.1} parent=1 // pred_check_branch
      %74 = sbr.rel (0) target = $region65
    $region64: #{tpu_custom_call.1} parent=1 // pred_region
      _
    $region65: #{tpu_custom_call.1} parent=1 // pred_fallthru
      _
    // Predicated region
    $region66: #{tpu_custom_call.1} parent=1 // pred_check
      _
    $region67: #{tpu_custom_call.1} parent=1 // pred_check_branch
      %76 = sbr.rel (0) target = $region69
    $region68: #{tpu_custom_call.1} parent=1 // pred_region
      %77 = dma.done [#allocation5], 64
    $region69: #{tpu_custom_call.1} parent=1 // pred_fallthru
      _
    // Predicated region
    $region70: #{tpu_custom_call.1} parent=1 // pred_check
      _
    $region71: #{tpu_custom_call.1} parent=1 // pred_check_branch
      %79 = sbr.rel (0) target = $region73
    $region72: #{tpu_custom_call.1} parent=1 // pred_region
      %80 = dma.done [#allocation8], 16
    $region73: #{tpu_custom_call.1} parent=1 // pred_fallthru
      _
    %s81 = sld [smem:[#allocation2]]
    %v82 = vld [vmem:[%s1] sm:$0xff]
    %v83 = vld [vmem:[#allocation4] sm:$0xf]
    %v84 = vld [vmem:[#allocation7] sm:$0x1]
    %v85 = vld [vmem:[%s4] sm:$0x1]
    %v86 = vld [vmem:[%s5] sm:$0xff]
    %v87 = vld [vmem:[%s5 + $0x8] sm:$0xff]
    %v88 = vld [vmem:[%s5 + $0x10] sm:$0xff]
    %v89 = vld [vmem:[%s5 + $0x18] sm:$0xff]
    %v90 = vld [vmem:[%s6] sm:$0x1]
    %v91 = vld [vmem:[%s7] sm:$0xff]
    %v92 = vld [vmem:[%s7 + $0x8] sm:$0xff]
    %v93 = vld [vmem:[%s7 + $0x10] sm:$0xff]
    %v94 = vld [vmem:[%s7 + $0x18] sm:$0xff]
    %v95 = vld [vmem:[%s8] sm:$0xf]
    %v96 = vld [vmem:[%s9] sm:$0x1]
    %v97 = vld [vmem:[%s10] sm:$0xff]
    %v98 = vld [vmem:[%s10 + $0x8] sm:$0xff]
    %v99 = vld [vmem:[%s10 + $0x10] sm:$0xff]
    %v100 = vld [vmem:[%s10 + $0x18] sm:$0xff]
    %v101 = vld [vmem:[%s11] sm:$0x1]
    %v102 = vld [vmem:[%s12] sm:$0xff]
    %v103 = vld [vmem:[%s12 + $0x8] sm:$0xff]
    %v104 = vld [vmem:[%s12 + $0x10] sm:$0xff]
    %v105 = vld [vmem:[%s12 + $0x18] sm:$0xff]
    %v106 = vld [vmem:[%s13] sm:$0x1]
    %v107 = vld [vmem:[%s14] sm:$0xff]
    %v108 = vld [vmem:[%s14 + $0x8] sm:$0xff]
    %v109 = vld [vmem:[%s14 + $0x10] sm:$0xff]
    %v110 = vld [vmem:[%s14 + $0x18] sm:$0xff]
    %v111 = vld [vmem:[#allocation3] sm:$0x1]
    %v112 = vstv %s81
    %v113 = vmul.f32 %v112, %v84
    %v115 = vlaneseq
    %v116 = vshrl.u32 %v115, 7
    %v117 = vsub.s32 0, %v116
    %v118 = vrot.slane %v113, %v117
    %vm120 = vcmask 31744
    %v122 = vsel %vm120, %v82, 0
    %vm124 = vcmask 1043456
    %v126 = vsel %vm124, %v83, 0
    %128 = vmatprep.subr.mxu0 0.0
    %129 = vmatpush1.msra.mxu0 %v126
    %130 = vmatprep.subr.mxu0 0.0
    %131 = vmatpush1.msra.mxu0 0.0
    %132 = vmatprep.subr.mxu0 0.0
    %133 = vmatpush1.msra.mxu0 0.0
    %134 = vmatprep.subr.mxu0 0.0
    %135 = vmatpush1.msra.mxu0 0.0
    %136 = vmatprep.subr.mxu0 0.0
    %137 = vmatpush1.msra.mxu0 0.0
    %138 = vmatprep.subr.mxu0 0.0
    %139 = vmatpush1.msra.mxu0 0.0
    %140 = vmatprep.subr.mxu0 0.0
    %141 = vmatpush1.msra.mxu0 0.0
    %142 = vmatprep.subr.mxu0 0.0
    %143 = vmatpush1.msra.mxu0 0.0
    %144 = vmatprep.subr.mxu0 0.0
    %145 = vmatpush1.msra.mxu0 0.0
    %146 = vmatprep.subr.mxu0 0.0
    %147 = vmatpush1.msra.mxu0 0.0
    %148 = vmatprep.subr.mxu0 0.0
    %149 = vmatpush1.msra.mxu0 0.0
    %150 = vmatprep.subr.mxu0 0.0
    %151 = vmatpush1.msra.mxu0 0.0
    %152 = vmatprep.subr.mxu0 0.0
    %153 = vmatpush1.msra.mxu0 0.0
    %154 = vmatprep.subr.mxu0 0.0
    %155 = vmatpush1.msra.mxu0 0.0
    %156 = vmatprep.subr.mxu0 0.0
    %157 = vmatpush1.msra.mxu0 0.0
    %158 = vmatprep.subr.mxu0 0.0
    %159 = vmatpush1.msra.mxu0 0.0
    %160 = vmatprep.subr.mxu0 0.0
    %161 = vmatpush1.msra.mxu0 0.0
    %162 = vmatprep.subr.mxu0 0.0
    %163 = vmatpush1.msra.mxu0 0.0
    %164 = vmatprep.subr.mxu0 0.0
    %165 = vmatpush1.msra.mxu0 0.0
    %166 = vmatprep.subr.mxu0 0.0
    %167 = vmatpush1.msra.mxu0 0.0
    %168 = vmatprep.subr.mxu0 0.0
    %169 = vmatpush1.msra.mxu0 0.0
    %170 = vmatprep.subr.mxu0 0.0
    %171 = vmatpush1.msra.mxu0 0.0
    %172 = vmatprep.subr.mxu0 0.0
    %173 = vmatpush1.msra.mxu0 0.0
    %174 = vmatprep.subr.mxu0 0.0
    %175 = vmatpush1.msra.mxu0 0.0
    %176 = vmatprep.subr.mxu0 0.0
    %177 = vmatpush1.msra.mxu0 0.0
    %178 = vmatprep.subr.mxu0 0.0
    %179 = vmatpush1.msra.mxu0 0.0
    %180 = vmatprep.subr.mxu0 0.0
    %181 = vmatpush1.msra.mxu0 0.0
    %182 = vmatprep.subr.mxu0 0.0
    %183 = vmatpush1.msra.mxu0 0.0
    %184 = vmatprep.subr.mxu0 0.0
    %185 = vmatpush1.msra.mxu0 0.0
    %186 = vmatprep.subr.mxu0 0.0
    %187 = vmatpush1.msra.mxu0 0.0
    %188 = vmatprep.subr.mxu0 0.0
    %189 = vmatpush1.msra.mxu0 0.0
    %190 = vmatprep.subr.mxu0 0.0
    %191 = vmatpush1.msra.mxu0 0.0
    %192 = vmatprep.mubr.f32.mxu0 0.0
    %193 = vmatmul.mubr.f32.gmra.mrb[0].mxu0 %v122
    %v194 = vpop.f32.mrb[0].mxu0
    %v195 = vadd.f32 %v118, %v194
    %v196 = vpop.f32.mrb[0].mxu0
    %197 = vdwg.mxu0
    %v199 = vlaneseq
    %v200 = vshrl.u32 %v199, 7
    %v201 = vsub.s32 0, %v200
    %v202 = vrot.slane %v85, %v201
    %v204 = vadd.f32 %v195, %v202
    %v205 = vtanh.pop %v204
    %v206 = vmul.f32 %v205, %v205
    %v207 = vsub.f32 1.0, %v206
    %v209 = vlaneseq
    %v210 = vshrl.u32 %v209, 7
    %v211 = vsub.s32 0, %v210
    %v212 = vrot.slane %v90, %v211
    %vm214 = vcmask 261120
    %v216 = vsel %vm214, %v205, 0
    %218 = vmatprep.subr.mxu0 0.0
    %219 = vmatpush1.msra.mxu0 %v86
    %220 = vmatprep.subr.mxu0 0.0
    %221 = vmatpush1.msra.mxu0 %v87
    %222 = vmatprep.subr.mxu0 0.0
    %223 = vmatpush1.msra.mxu0 %v88
    %224 = vmatprep.subr.mxu0 0.0
    %225 = vmatpush1.msra.mxu0 %v89
    %226 = vmatprep.subr.mxu0 0.0
    %227 = vmatpush1.msra.mxu0 0.0
    %228 = vmatprep.subr.mxu0 0.0
    %229 = vmatpush1.msra.mxu0 0.0
    %230 = vmatprep.subr.mxu0 0.0
    %231 = vmatpush1.msra.mxu0 0.0
    %232 = vmatprep.subr.mxu0 0.0
    %233 = vmatpush1.msra.mxu0 0.0
    %234 = vmatprep.subr.mxu0 0.0
    %235 = vmatpush1.msra.mxu0 0.0
    %236 = vmatprep.subr.mxu0 0.0
    %237 = vmatpush1.msra.mxu0 0.0
    %238 = vmatprep.subr.mxu0 0.0
    %239 = vmatpush1.msra.mxu0 0.0
    %240 = vmatprep.subr.mxu0 0.0
    %241 = vmatpush1.msra.mxu0 0.0
    %242 = vmatprep.subr.mxu0 0.0
    %243 = vmatpush1.msra.mxu0 0.0
    %244 = vmatprep.subr.mxu0 0.0
    %245 = vmatpush1.msra.mxu0 0.0
    %246 = vmatprep.subr.mxu0 0.0
    %247 = vmatpush1.msra.mxu0 0.0
    %248 = vmatprep.subr.mxu0 0.0
    %249 = vmatpush1.msra.mxu0 0.0
    %250 = vmatprep.subr.mxu0 0.0
    %251 = vmatpush1.msra.mxu0 0.0
    %252 = vmatprep.subr.mxu0 0.0
    %253 = vmatpush1.msra.mxu0 0.0
    %254 = vmatprep.subr.mxu0 0.0
    %255 = vmatpush1.msra.mxu0 0.0
    %256 = vmatprep.subr.mxu0 0.0
    %257 = vmatpush1.msra.mxu0 0.0
    %258 = vmatprep.subr.mxu0 0.0
    %259 = vmatpush1.msra.mxu0 0.0
    %260 = vmatprep.subr.mxu0 0.0
    %261 = vmatpush1.msra.mxu0 0.0
    %262 = vmatprep.subr.mxu0 0.0
    %263 = vmatpush1.msra.mxu0 0.0
    %264 = vmatprep.subr.mxu0 0.0
    %265 = vmatpush1.msra.mxu0 0.0
    %266 = vmatprep.subr.mxu0 0.0
    %267 = vmatpush1.msra.mxu0 0.0
    %268 = vmatprep.subr.mxu0 0.0
    %269 = vmatpush1.msra.mxu0 0.0
    %270 = vmatprep.subr.mxu0 0.0
    %271 = vmatpush1.msra.mxu0 0.0
    %272 = vmatprep.subr.mxu0 0.0
    %273 = vmatpush1.msra.mxu0 0.0
    %274 = vmatprep.subr.mxu0 0.0
    %275 = vmatpush1.msra.mxu0 0.0
    %276 = vmatprep.subr.mxu0 0.0
    %277 = vmatpush1.msra.mxu0 0.0
    %278 = vmatprep.subr.mxu0 0.0
    %279 = vmatpush1.msra.mxu0 0.0
    %280 = vmatprep.subr.mxu0 0.0
    %281 = vmatpush1.msra.mxu0 0.0
    %282 = vmatprep.mubr.f32.mxu0 0.0
    %283 = vmatmul.mubr.f32.gmra.mrb[0].mxu0 %v216
    %v284 = vpop.f32.mrb[0].mxu0
    %v285 = vadd.f32 %v212, %v284
    %v286 = vpop.f32.mrb[0].mxu0
    %287 = vdwg.mxu0
    %v288 = vtanh.pop %v285
    %v289 = vmul.f32 %v288, %v288
    %v290 = vsub.f32 1.0, %v289
    %v292 = vlaneseq
    %v293 = vshrl.u32 %v292, 7
    %v294 = vsub.s32 0, %v293
    %v295 = vrot.slane %v96, %v294
    %v298 = vsel %vm214, %v288, 0
    %300 = vmatprep.subr.mxu0 0.0
    %301 = vmatpush1.msra.mxu0 %v91
    %302 = vmatprep.subr.mxu0 0.0
    %303 = vmatpush1.msra.mxu0 %v92
    %304 = vmatprep.subr.mxu0 0.0
    %305 = vmatpush1.msra.mxu0 %v93
    %306 = vmatprep.subr.mxu0 0.0
    %307 = vmatpush1.msra.mxu0 %v94
    %308 = vmatprep.subr.mxu0 0.0
    %309 = vmatpush1.msra.mxu0 0.0
    %310 = vmatprep.subr.mxu0 0.0
    %311 = vmatpush1.msra.mxu0 0.0
    %312 = vmatprep.subr.mxu0 0.0
    %313 = vmatpush1.msra.mxu0 0.0
    %314 = vmatprep.subr.mxu0 0.0
    %315 = vmatpush1.msra.mxu0 0.0
    %316 = vmatprep.subr.mxu0 0.0
    %317 = vmatpush1.msra.mxu0 0.0
    %318 = vmatprep.subr.mxu0 0.0
    %319 = vmatpush1.msra.mxu0 0.0
    %320 = vmatprep.subr.mxu0 0.0
    %321 = vmatpush1.msra.mxu0 0.0
    %322 = vmatprep.subr.mxu0 0.0
    %323 = vmatpush1.msra.mxu0 0.0
    %324 = vmatprep.subr.mxu0 0.0
    %325 = vmatpush1.msra.mxu0 0.0
    %326 = vmatprep.subr.mxu0 0.0
    %327 = vmatpush1.msra.mxu0 0.0
    %328 = vmatprep.subr.mxu0 0.0
    %329 = vmatpush1.msra.mxu0 0.0
    %330 = vmatprep.subr.mxu0 0.0
    %331 = vmatpush1.msra.mxu0 0.0
    %332 = vmatprep.subr.mxu0 0.0
    %333 = vmatpush1.msra.mxu0 0.0
    %334 = vmatprep.subr.mxu0 0.0
    %335 = vmatpush1.msra.mxu0 0.0
    %336 = vmatprep.subr.mxu0 0.0
    %337 = vmatpush1.msra.mxu0 0.0
    %338 = vmatprep.subr.mxu0 0.0
    %339 = vmatpush1.msra.mxu0 0.0
    %340 = vmatprep.subr.mxu0 0.0
    %341 = vmatpush1.msra.mxu0 0.0
    %342 = vmatprep.subr.mxu0 0.0
    %343 = vmatpush1.msra.mxu0 0.0
    %344 = vmatprep.subr.mxu0 0.0
    %345 = vmatpush1.msra.mxu0 0.0
    %346 = vmatprep.subr.mxu0 0.0
    %347 = vmatpush1.msra.mxu0 0.0
    %348 = vmatprep.subr.mxu0 0.0
    %349 = vmatpush1.msra.mxu0 0.0
    %350 = vmatprep.subr.mxu0 0.0
    %351 = vmatpush1.msra.mxu0 0.0
    %352 = vmatprep.subr.mxu0 0.0
    %353 = vmatpush1.msra.mxu0 0.0
    %354 = vmatprep.subr.mxu0 0.0
    %355 = vmatpush1.msra.mxu0 0.0
    %356 = vmatprep.subr.mxu0 0.0
    %357 = vmatpush1.msra.mxu0 0.0
    %358 = vmatprep.subr.mxu0 0.0
    %359 = vmatpush1.msra.mxu0 0.0
    %360 = vmatprep.subr.mxu0 0.0
    %361 = vmatpush1.msra.mxu0 0.0
    %362 = vmatprep.subr.mxu0 0.0
    %363 = vmatpush1.msra.mxu0 0.0
    %364 = vmatprep.mubr.f32.mxu0 0.0
    %365 = vmatmul.mubr.f32.gmra.mrb[0].mxu0 %v298
    %v366 = vpop.f32.mrb[0].mxu0
    %v367 = vadd.f32 %v295, %v366
    %v368 = vpop.f32.mrb[0].mxu0
    %369 = vdwg.mxu0
    %v370 = vlaneseq
    %v371 = vshrl.u32 %v370, 7
    %v372 = vsub.s32 0, %v371
    %v373 = vrot.slane %v83, %v372
    %v374 = vmul.f32 %v207, %v373
    %v375 = vlaneseq
    %v376 = vshrl.u32 %v375, 7
    %v377 = vsub.s32 1, %v376
    %v378 = vrot.slane %v83, %v377
    %v379 = vmul.f32 %v207, %v378
    %v380 = vlaneseq
    %v381 = vshrl.u32 %v380, 7
    %v382 = vsub.s32 2, %v381
    %v383 = vrot.slane %v83, %v382
    %v384 = vmul.f32 %v207, %v383
    %v385 = vlaneseq
    %v386 = vshrl.u32 %v385, 7
    %v387 = vsub.s32 3, %v386
    %v388 = vrot.slane %v83, %v387
    %v389 = vmul.f32 %v207, %v388
    %v391 = vsel %vm214, %v374, 0
    %v394 = vsel %vm214, %v379, 0
    %v397 = vsel %vm214, %v384, 0
    %v400 = vsel %vm214, %v389, 0
    %402 = vmatprep.subr.mxu0 0.0
    %403 = vmatpush1.msra.mxu0 %v86
    %404 = vmatprep.subr.mxu0 0.0
    %405 = vmatpush1.msra.mxu0 %v87
    %406 = vmatprep.subr.mxu0 0.0
    %407 = vmatpush1.msra.mxu0 %v88
    %408 = vmatprep.subr.mxu0 0.0
    %409 = vmatpush1.msra.mxu0 %v89
    %410 = vmatprep.subr.mxu0 0.0
    %411 = vmatpush1.msra.mxu0 0.0
    %412 = vmatprep.subr.mxu0 0.0
    %413 = vmatpush1.msra.mxu0 0.0
    %414 = vmatprep.subr.mxu0 0.0
    %415 = vmatpush1.msra.mxu0 0.0
    %416 = vmatprep.subr.mxu0 0.0
    %417 = vmatpush1.msra.mxu0 0.0
    %418 = vmatprep.subr.mxu0 0.0
    %419 = vmatpush1.msra.mxu0 0.0
    %420 = vmatprep.subr.mxu0 0.0
    %421 = vmatpush1.msra.mxu0 0.0
    %422 = vmatprep.subr.mxu0 0.0
    %423 = vmatpush1.msra.mxu0 0.0
    %424 = vmatprep.subr.mxu0 0.0
    %425 = vmatpush1.msra.mxu0 0.0
    %426 = vmatprep.subr.mxu0 0.0
    %427 = vmatpush1.msra.mxu0 0.0
    %428 = vmatprep.subr.mxu0 0.0
    %429 = vmatpush1.msra.mxu0 0.0
    %430 = vmatprep.subr.mxu0 0.0
    %431 = vmatpush1.msra.mxu0 0.0
    %432 = vmatprep.subr.mxu0 0.0
    %433 = vmatpush1.msra.mxu0 0.0
    %434 = vmatprep.subr.mxu0 0.0
    %435 = vmatpush1.msra.mxu0 0.0
    %436 = vmatprep.subr.mxu0 0.0
    %437 = vmatpush1.msra.mxu0 0.0
    %438 = vmatprep.subr.mxu0 0.0
    %439 = vmatpush1.msra.mxu0 0.0
    %440 = vmatprep.subr.mxu0 0.0
    %441 = vmatpush1.msra.mxu0 0.0
    %442 = vmatprep.subr.mxu0 0.0
    %443 = vmatpush1.msra.mxu0 0.0
    %444 = vmatprep.subr.mxu0 0.0
    %445 = vmatpush1.msra.mxu0 0.0
    %446 = vmatprep.subr.mxu0 0.0
    %447 = vmatpush1.msra.mxu0 0.0
    %448 = vmatprep.subr.mxu0 0.0
    %449 = vmatpush1.msra.mxu0 0.0
    %450 = vmatprep.subr.mxu0 0.0
    %451 = vmatpush1.msra.mxu0 0.0
    %452 = vmatprep.subr.mxu0 0.0
    %453 = vmatpush1.msra.mxu0 0.0
    %454 = vmatprep.subr.mxu0 0.0
    %455 = vmatpush1.msra.mxu0 0.0
    %456 = vmatprep.subr.mxu0 0.0
    %457 = vmatpush1.msra.mxu0 0.0
    %458 = vmatprep.subr.mxu0 0.0
    %459 = vmatpush1.msra.mxu0 0.0
    %460 = vmatprep.subr.mxu0 0.0
    %461 = vmatpush1.msra.mxu0 0.0
    %462 = vmatprep.subr.mxu0 0.0
    %463 = vmatpush1.msra.mxu0 0.0
    %464 = vmatprep.subr.mxu0 0.0
    %465 = vmatpush1.msra.mxu0 0.0
    %466 = vmatprep.mubr.f32.mxu0 0.0
    %467 = vmatmul.mubr.f32.gmra.mrb[0].mxu0 %v391
    %v468 = vpop.f32.mrb[0].mxu0
    %v469 = vadd.f32 0.0, %v468
    %v470 = vpop.f32.mrb[0].mxu0
    %471 = vmatprep.mubr.f32.mxu0 0.0
    %472 = vmatmul.mubr.f32.gmra.mrb[0].mxu0 %v394
    %v473 = vpop.f32.mrb[0].mxu0
    %v474 = vadd.f32 0.0, %v473
    %v475 = vpop.f32.mrb[0].mxu0
    %476 = vmatprep.mubr.f32.mxu0 0.0
    %477 = vmatmul.mubr.f32.gmra.mrb[0].mxu0 %v397
    %v478 = vpop.f32.mrb[0].mxu0
    %v479 = vadd.f32 0.0, %v478
    %v480 = vpop.f32.mrb[0].mxu0
    %481 = vmatprep.mubr.f32.mxu0 0.0
    %482 = vmatmul.mubr.f32.gmra.mrb[0].mxu0 %v400
    %v483 = vpop.f32.mrb[0].mxu0
    %v484 = vadd.f32 0.0, %v483
    %v485 = vpop.f32.mrb[0].mxu0
    %486 = vdwg.mxu0
    %v487 = vmul.f32 %v290, %v469
    %v488 = vmul.f32 %v290, %v474
    %v489 = vmul.f32 %v290, %v479
    %v490 = vmul.f32 %v290, %v484
    %v491 = vlaneseq
    %v492 = vshrl.u32 %v491, 7
    %v493 = vsub.s32 0, %v492
    %v494 = vrot.slane %v95, %v493
    %v495 = vlaneseq
    %v496 = vshrl.u32 %v495, 7
    %v497 = vsub.s32 1, %v496
    %v498 = vrot.slane %v95, %v497
    %v499 = vlaneseq
    %v500 = vshrl.u32 %v499, 7
    %v501 = vsub.s32 2, %v500
    %v502 = vrot.slane %v95, %v501
    %v503 = vlaneseq
    %v504 = vshrl.u32 %v503, 7
    %v505 = vsub.s32 3, %v504
    %v506 = vrot.slane %v95, %v505
    %v507 = vmul.f32 %v487, %v494
    %v508 = vmul.f32 %v488, %v498
    %v509 = vmul.f32 %v489, %v502
    %v510 = vmul.f32 %v490, %v506
    %v511 = vsel %vm214, %v507, 0.0
    %512 = vadd.xlane.f32.xlu0 %v511
    %v513 = vpop.xlane.xlu0 %512
    %v514 = vsel %vm214, %v508, 0.0
    %515 = vadd.xlane.f32.xlu0 %v514
    %v516 = vpop.xlane.xlu0 %515
    %v517 = vsel %vm214, %v509, 0.0
    %518 = vadd.xlane.f32.xlu0 %v517
    %v519 = vpop.xlane.xlu0 %518
    %v520 = vsel %vm214, %v510, 0.0
    %521 = vadd.xlane.f32.xlu0 %v520
    %v522 = vpop.xlane.xlu0 %521
    %v523 = vadd.f32 %v513, %v516
    %v524 = vadd.f32 %v523, %v519
    %v525 = vadd.f32 %v524, %v522
    %v527 = vlaneseq
    %v528 = vshrl.u32 %v527, 7
    %v529 = vsub.s32 0, %v528
    %v530 = vrot.slane %v101, %v529
    %532 = vrot.lane.b32.xlu0 %v205, 96
    %v533 = vpop.permute.xlu0 %532
    %v534 = vsel %vm214, %v533, 0
    %536 = vmatprep.subr.mxu0 0.0
    %537 = vmatpush1.msra.mxu0 %v97
    %538 = vmatprep.subr.mxu0 0.0
    %539 = vmatpush1.msra.mxu0 %v98
    %540 = vmatprep.subr.mxu0 0.0
    %541 = vmatpush1.msra.mxu0 %v99
    %542 = vmatprep.subr.mxu0 0.0
    %543 = vmatpush1.msra.mxu0 %v100
    %544 = vmatprep.subr.mxu0 0.0
    %545 = vmatpush1.msra.mxu0 0.0
    %546 = vmatprep.subr.mxu0 0.0
    %547 = vmatpush1.msra.mxu0 0.0
    %548 = vmatprep.subr.mxu0 0.0
    %549 = vmatpush1.msra.mxu0 0.0
    %550 = vmatprep.subr.mxu0 0.0
    %551 = vmatpush1.msra.mxu0 0.0
    %552 = vmatprep.subr.mxu0 0.0
    %553 = vmatpush1.msra.mxu0 0.0
    %554 = vmatprep.subr.mxu0 0.0
    %555 = vmatpush1.msra.mxu0 0.0
    %556 = vmatprep.subr.mxu0 0.0
    %557 = vmatpush1.msra.mxu0 0.0
    %558 = vmatprep.subr.mxu0 0.0
    %559 = vmatpush1.msra.mxu0 0.0
    %560 = vmatprep.subr.mxu0 0.0
    %561 = vmatpush1.msra.mxu0 0.0
    %562 = vmatprep.subr.mxu0 0.0
    %563 = vmatpush1.msra.mxu0 0.0
    %564 = vmatprep.subr.mxu0 0.0
    %565 = vmatpush1.msra.mxu0 0.0
    %566 = vmatprep.subr.mxu0 0.0
    %567 = vmatpush1.msra.mxu0 0.0
    %568 = vmatprep.subr.mxu0 0.0
    %569 = vmatpush1.msra.mxu0 0.0
    %570 = vmatprep.subr.mxu0 0.0
    %571 = vmatpush1.msra.mxu0 0.0
    %572 = vmatprep.subr.mxu0 0.0
    %573 = vmatpush1.msra.mxu0 0.0
    %574 = vmatprep.subr.mxu0 0.0
    %575 = vmatpush1.msra.mxu0 0.0
    %576 = vmatprep.subr.mxu0 0.0
    %577 = vmatpush1.msra.mxu0 0.0
    %578 = vmatprep.subr.mxu0 0.0
    %579 = vmatpush1.msra.mxu0 0.0
    %580 = vmatprep.subr.mxu0 0.0
    %581 = vmatpush1.msra.mxu0 0.0
    %582 = vmatprep.subr.mxu0 0.0
    %583 = vmatpush1.msra.mxu0 0.0
    %584 = vmatprep.subr.mxu0 0.0
    %585 = vmatpush1.msra.mxu0 0.0
    %586 = vmatprep.subr.mxu0 0.0
    %587 = vmatpush1.msra.mxu0 0.0
    %588 = vmatprep.subr.mxu0 0.0
    %589 = vmatpush1.msra.mxu0 0.0
    %590 = vmatprep.subr.mxu0 0.0
    %591 = vmatpush1.msra.mxu0 0.0
    %592 = vmatprep.subr.mxu0 0.0
    %593 = vmatpush1.msra.mxu0 0.0
    %594 = vmatprep.subr.mxu0 0.0
    %595 = vmatpush1.msra.mxu0 0.0
    %596 = vmatprep.subr.mxu0 0.0
    %597 = vmatpush1.msra.mxu0 0.0
    %598 = vmatprep.subr.mxu0 0.0
    %599 = vmatpush1.msra.mxu0 0.0
    %600 = vmatprep.mubr.f32.mxu0 0.0
    %601 = vmatmul.mubr.f32.gmra.mrb[0].mxu0 %v534
    %v602 = vpop.f32.mrb[0].mxu0
    %v603 = vadd.f32 %v530, %v602
    %v604 = vpop.f32.mrb[0].mxu0
    %605 = vdwg.mxu0
    %v606 = vtanh.pop %v603
    %v608 = vlaneseq
    %v609 = vshrl.u32 %v608, 7
    %v610 = vsub.s32 0, %v609
    %v611 = vrot.slane %v106, %v610
    %v614 = vsel %vm214, %v606, 0
    %616 = vmatprep.subr.mxu0 0.0
    %617 = vmatpush1.msra.mxu0 %v102
    %618 = vmatprep.subr.mxu0 0.0
    %619 = vmatpush1.msra.mxu0 %v103
    %620 = vmatprep.subr.mxu0 0.0
    %621 = vmatpush1.msra.mxu0 %v104
    %622 = vmatprep.subr.mxu0 0.0
    %623 = vmatpush1.msra.mxu0 %v105
    %624 = vmatprep.subr.mxu0 0.0
    %625 = vmatpush1.msra.mxu0 0.0
    %626 = vmatprep.subr.mxu0 0.0
    %627 = vmatpush1.msra.mxu0 0.0
    %628 = vmatprep.subr.mxu0 0.0
    %629 = vmatpush1.msra.mxu0 0.0
    %630 = vmatprep.subr.mxu0 0.0
    %631 = vmatpush1.msra.mxu0 0.0
    %632 = vmatprep.subr.mxu0 0.0
    %633 = vmatpush1.msra.mxu0 0.0
    %634 = vmatprep.subr.mxu0 0.0
    %635 = vmatpush1.msra.mxu0 0.0
    %636 = vmatprep.subr.mxu0 0.0
    %637 = vmatpush1.msra.mxu0 0.0
    %638 = vmatprep.subr.mxu0 0.0
    %639 = vmatpush1.msra.mxu0 0.0
    %640 = vmatprep.subr.mxu0 0.0
    %641 = vmatpush1.msra.mxu0 0.0
    %642 = vmatprep.subr.mxu0 0.0
    %643 = vmatpush1.msra.mxu0 0.0
    %644 = vmatprep.subr.mxu0 0.0
    %645 = vmatpush1.msra.mxu0 0.0
    %646 = vmatprep.subr.mxu0 0.0
    %647 = vmatpush1.msra.mxu0 0.0
    %648 = vmatprep.subr.mxu0 0.0
    %649 = vmatpush1.msra.mxu0 0.0
    %650 = vmatprep.subr.mxu0 0.0
    %651 = vmatpush1.msra.mxu0 0.0
    %652 = vmatprep.subr.mxu0 0.0
    %653 = vmatpush1.msra.mxu0 0.0
    %654 = vmatprep.subr.mxu0 0.0
    %655 = vmatpush1.msra.mxu0 0.0
    %656 = vmatprep.subr.mxu0 0.0
    %657 = vmatpush1.msra.mxu0 0.0
    %658 = vmatprep.subr.mxu0 0.0
    %659 = vmatpush1.msra.mxu0 0.0
    %660 = vmatprep.subr.mxu0 0.0
    %661 = vmatpush1.msra.mxu0 0.0
    %662 = vmatprep.subr.mxu0 0.0
    %663 = vmatpush1.msra.mxu0 0.0
    %664 = vmatprep.subr.mxu0 0.0
    %665 = vmatpush1.msra.mxu0 0.0
    %666 = vmatprep.subr.mxu0 0.0
    %667 = vmatpush1.msra.mxu0 0.0
    %668 = vmatprep.subr.mxu0 0.0
    %669 = vmatpush1.msra.mxu0 0.0
    %670 = vmatprep.subr.mxu0 0.0
    %671 = vmatpush1.msra.mxu0 0.0
    %672 = vmatprep.subr.mxu0 0.0
    %673 = vmatpush1.msra.mxu0 0.0
    %674 = vmatprep.subr.mxu0 0.0
    %675 = vmatpush1.msra.mxu0 0.0
    %676 = vmatprep.subr.mxu0 0.0
    %677 = vmatpush1.msra.mxu0 0.0
    %678 = vmatprep.subr.mxu0 0.0
    %679 = vmatpush1.msra.mxu0 0.0
    %680 = vmatprep.mubr.f32.mxu0 0.0
    %681 = vmatmul.mubr.f32.gmra.mrb[0].mxu0 %v614
    %v682 = vpop.f32.mrb[0].mxu0
    %v683 = vadd.f32 %v611, %v682
    %v684 = vpop.f32.mrb[0].mxu0
    %685 = vdwg.mxu0
    %v686 = vtanh.pop %v683
    %v688 = vlaneseq
    %v689 = vshrl.u32 %v688, 7
    %v690 = vsub.s32 0, %v689
    %v691 = vrot.slane %v111, %v690
    %v694 = vsel %vm214, %v686, 0
    %696 = vmatprep.subr.mxu0 0.0
    %697 = vmatpush1.msra.mxu0 %v107
    %698 = vmatprep.subr.mxu0 0.0
    %699 = vmatpush1.msra.mxu0 %v108
    %700 = vmatprep.subr.mxu0 0.0
    %701 = vmatpush1.msra.mxu0 %v109
    %702 = vmatprep.subr.mxu0 0.0
    %703 = vmatpush1.msra.mxu0 %v110
    %704 = vmatprep.subr.mxu0 0.0
    %705 = vmatpush1.msra.mxu0 0.0
    %706 = vmatprep.subr.mxu0 0.0
    %707 = vmatpush1.msra.mxu0 0.0
    %708 = vmatprep.subr.mxu0 0.0
    %709 = vmatpush1.msra.mxu0 0.0
    %710 = vmatprep.subr.mxu0 0.0
    %711 = vmatpush1.msra.mxu0 0.0
    %712 = vmatprep.subr.mxu0 0.0
    %713 = vmatpush1.msra.mxu0 0.0
    %714 = vmatprep.subr.mxu0 0.0
    %715 = vmatpush1.msra.mxu0 0.0
    %716 = vmatprep.subr.mxu0 0.0
    %717 = vmatpush1.msra.mxu0 0.0
    %718 = vmatprep.subr.mxu0 0.0
    %719 = vmatpush1.msra.mxu0 0.0
    %720 = vmatprep.subr.mxu0 0.0
    %721 = vmatpush1.msra.mxu0 0.0
    %722 = vmatprep.subr.mxu0 0.0
    %723 = vmatpush1.msra.mxu0 0.0
    %724 = vmatprep.subr.mxu0 0.0
    %725 = vmatpush1.msra.mxu0 0.0
    %726 = vmatprep.subr.mxu0 0.0
    %727 = vmatpush1.msra.mxu0 0.0
    %728 = vmatprep.subr.mxu0 0.0
    %729 = vmatpush1.msra.mxu0 0.0
    %730 = vmatprep.subr.mxu0 0.0
    %731 = vmatpush1.msra.mxu0 0.0
    %732 = vmatprep.subr.mxu0 0.0
    %733 = vmatpush1.msra.mxu0 0.0
    %734 = vmatprep.subr.mxu0 0.0
    %735 = vmatpush1.msra.mxu0 0.0
    %736 = vmatprep.subr.mxu0 0.0
    %737 = vmatpush1.msra.mxu0 0.0
    %738 = vmatprep.subr.mxu0 0.0
    %739 = vmatpush1.msra.mxu0 0.0
    %740 = vmatprep.subr.mxu0 0.0
    %741 = vmatpush1.msra.mxu0 0.0
    %742 = vmatprep.subr.mxu0 0.0
    %743 = vmatpush1.msra.mxu0 0.0
    %744 = vmatprep.subr.mxu0 0.0
    %745 = vmatpush1.msra.mxu0 0.0
    %746 = vmatprep.subr.mxu0 0.0
    %747 = vmatpush1.msra.mxu0 0.0
    %748 = vmatprep.subr.mxu0 0.0
    %749 = vmatpush1.msra.mxu0 0.0
    %750 = vmatprep.subr.mxu0 0.0
    %751 = vmatpush1.msra.mxu0 0.0
    %752 = vmatprep.subr.mxu0 0.0
    %753 = vmatpush1.msra.mxu0 0.0
    %754 = vmatprep.subr.mxu0 0.0
    %755 = vmatpush1.msra.mxu0 0.0
    %756 = vmatprep.subr.mxu0 0.0
    %757 = vmatpush1.msra.mxu0 0.0
    %758 = vmatprep.subr.mxu0 0.0
    %759 = vmatpush1.msra.mxu0 0.0
    %760 = vmatprep.mubr.f32.mxu0 0.0
    %761 = vmatmul.mubr.f32.gmra.mrb[0].mxu0 %v694
    %v762 = vpop.f32.mrb[0].mxu0
    %v763 = vadd.f32 %v691, %v762
    %v764 = vpop.f32.mrb[0].mxu0
    %765 = vdwg.mxu0
    %v766 = vsub.f32 %v763, %v525
    %768 = vrot.lane.b32.xlu0 %v763, 4
    %v769 = vpop.permute.xlu0 %768
    %772 = vrot.lane.b32.xlu0 %v766, 5
    %v773 = vpop.permute.xlu0 %772
    %v775 = vsel %vm120, %v367, %v769
    %vm776 = vcmask 39936
    %v777 = vsel %vm776, %v775, %v773
    %vm778 = vcmask 48128
    %779 = vst.msk [vmem:[#allocation9] sm:$0xff] %vm778, %v777
    // Predicated region
    $region74: #{tpu_custom_call.1} parent=1 // pred_check
      _
    $region75: #{tpu_custom_call.1} parent=1 // pred_check_branch
      %781 = sbr.rel (0) target = $region77
    $region76: #{tpu_custom_call.1} parent=1 // pred_region
      %s783 = ssub.s32 128, 128
      %784 = vsyncadd [#allocation6], %s783
      %s786 = sshll.u32 [#allocation9], 4
      %s787 = int_to_ptr.vmem [resolvable:$true] %s786
      %789 = dma.vmem_to_hbm [thread:$0]  %s787, 128, %s16, [#allocation6]
    $region77: #{tpu_custom_call.1} parent=1 // pred_fallthru
      _
    // Predicated region
    $region78: #{tpu_custom_call.1} parent=1 // pred_check
      _
    $region79: #{tpu_custom_call.1} parent=1 // pred_check_branch
      %791 = sbr.rel (0) target = $region81
    $region80: #{tpu_custom_call.1} parent=1 // pred_region
      %792 = dma.done [#allocation6], 128
    $region81: #{tpu_custom_call.1} parent=1 // pred_fallthru
      _
    %793 = vsyncpa [#allocation5], 1
    %794 = vsyncpa [#allocation8], 1
    %795 = vsyncpa [#allocation6], 1

</llo_original>
